<compile_context>
chip_gen: v5e
topology: v5e:2x2
jax: 0.10.0
libtpu: 0.0.40
codegen_flags: <defaults>
</compile_context>

<pallas_src>
import numpy as np
import jax
import jax.numpy as jnp
from jax import lax
from jax.experimental import pallas as pl
from jax.experimental.pallas import tpu as pltpu


# --------------------------------------------------------------------------
# helpers
# --------------------------------------------------------------------------
def _round_up(v, m):
    return (v + m - 1) // m * m


def _sublane(dtype):
    # native sublane tile rows: 8 for 32-bit, 16 for bf16, 32 for int8
    return 8 * max(1, 4 // jnp.dtype(dtype).itemsize)


def _blk_bytes(shape, dtype):
    """Layout-aware VMEM bytes of one buffered block (lane/sublane padded)."""
    dtype = jnp.dtype(dtype)
    shape = tuple(int(s) for s in shape)
    if len(shape) < 2:
        shape = (1,) * (2 - len(shape)) + shape
    lead = 1
    for s in shape[:-2]:
        lead *= s
    return (lead * _round_up(shape[-2], _sublane(dtype))
            * _round_up(shape[-1], 128) * dtype.itemsize)


def _vmem_capacity_bytes():
    try:
        info = pltpu.get_tpu_info()
        cap = getattr(info, "vmem_capacity_bytes", None)
        if cap:
            return int(cap)
    except Exception:
        pass
    return 64 << 20          # conservative fallback (v7x per-TC VMEM)


def _est_resident(TN, dim_p, hid_p, E, cdt, out_dtype):
    tile = (2 * _blk_bytes((TN, dim_p), cdt)              # x tile (dbl buffered)
            + 2 * _blk_bytes((E, TN, 1), jnp.float32)     # gate column block
            + 2 * _blk_bytes((TN, dim_p), out_dtype)      # out tile
            + _blk_bytes((TN, dim_p), jnp.float32)        # f32 accumulator
            + _blk_bytes((TN, hid_p), jnp.float32))       # h intermediate headroom
    weights = 2 * (_blk_bytes((E, dim_p, hid_p), cdt)
                   + _blk_bytes((E, hid_p, dim_p), cdt)
                   + _blk_bytes((E, 1, hid_p), jnp.float32)
                   + _blk_bytes((E, 1, dim_p), jnp.float32))
    return tile + weights


def _est_streamed(TN, dim_p, hid_p, E, cdt, out_dtype):
    return (2 * _blk_bytes((TN, dim_p), cdt)
            + 2 * _blk_bytes((E, TN, 1), jnp.float32)
            + 2 * _blk_bytes((TN, dim_p), out_dtype)
            + _blk_bytes((TN, dim_p), jnp.float32)
            + _blk_bytes((TN, hid_p), jnp.float32)
            + 2 * (_blk_bytes((dim_p, hid_p), cdt)
                   + _blk_bytes((hid_p, dim_p), cdt)
                   + _blk_bytes((1, hid_p), jnp.float32)
                   + _blk_bytes((1, dim_p), jnp.float32)))


def _plan(N, dim_p, hid_p, E, cdt, out_dtype, budget, token_tile, allow_bf16):
    """Pick (mode, token_tile, compute_dtype) from the layout-aware VMEM model."""
    TN = min(_round_up(N, 8), max(8, _round_up(token_tile, 8)))
    if N >= 512:                       # >=2 balanced tiles so megacore can split
        TN = min(TN, _round_up(-(-N // 2), 8))
    if _est_resident(TN, dim_p, hid_p, E, cdt, out_dtype) <= budget:
        return "resident", TN, cdt
    tn = TN
    while tn > 8 and _est_streamed(tn, dim_p, hid_p, E, cdt, out_dtype) > budget:
        tn = max(8, _round_up(tn // 2, 8))
    if _est_streamed(tn, dim_p, hid_p, E, cdt, out_dtype) <= budget:
        return "streamed", tn, cdt
    if allow_bf16 and cdt == jnp.dtype(jnp.float32):
        return _plan(N, dim_p, hid_p, E, jnp.dtype(jnp.bfloat16), out_dtype,
                     budget, token_tile, False)
    # TODO(synk): add an innermost hidden-K grid axis (h/y scratch accumulators)
    #             for experts so large that a single weight block exceeds VMEM.
    return "streamed", tn, cdt


# --------------------------------------------------------------------------
# kernels
# --------------------------------------------------------------------------
def _moe_resident_kernel(flags_ref, x_ref, g_ref, w1_ref, b1_ref, w2_ref,
                         b2_ref, out_ref, acc_ref):
    """Grid (token_tiles,); all expert weights resident in VMEM (fetched once)."""
    t = pl.program_id(0)
    n_exp = w1_ref.shape[0]
    acc_ref[...] = jnp.zeros_like(acc_ref)
    x = x_ref[...]
    for e in range(n_exp):                        # static unroll; E small here
        @pl.when(flags_ref[t * n_exp + e] != 0)   # skip experts with no routed token
        def _(e=e):
            h = jnp.dot(x, w1_ref[e], preferred_element_type=jnp.float32)
            h = jnp.maximum(h + b1_ref[e], 0.0)
            y = jnp.dot(h.astype(w2_ref.dtype), w2_ref[e],
                        preferred_element_type=jnp.float32) + b2_ref[e]
            y = jnp.where(jnp.isnan(y), 0.0, y)   # torch: NaN expert output -> 0
            acc_ref[...] += g_ref[e] * y
    out_ref[...] = acc_ref[...].astype(out_ref.dtype)


def _moe_streamed_kernel(flags_ref, x_ref, g_ref, w1_ref, b1_ref, w2_ref,
                         b2_ref, out_ref, acc_ref):
    """Grid (token_tiles, experts); expert weights streamed per expert step."""
    t = pl.program_id(0)
    e = pl.program_id(1)
    n_exp = pl.num_programs(1)

    @pl.when(e == 0)
    def _():
        acc_ref[...] = jnp.zeros_like(acc_ref)

    @pl.when(flags_ref[t * n_exp + e] != 0)       # routing-sparsity compute skip
    def _():
        h = jnp.dot(x_ref[...], w1_ref[...], preferred_element_type=jnp.float32)
        h = jnp.maximum(h + b1_ref[...], 0.0)
        y = jnp.dot(h.astype(w2_ref.dtype), w2_ref[...],
                    preferred_element_type=jnp.float32) + b2_ref[...]
        y = jnp.where(jnp.isnan(y), 0.0, y)
        acc_ref[...] += g_ref[e] * y

    @pl.when(e == n_exp - 1)
    def _():
        out_ref[...] = acc_ref[...].astype(out_ref.dtype)


# --------------------------------------------------------------------------
# gate (pure JAX, global over tokens)
# --------------------------------------------------------------------------
def _switch_gate(x, wg, bg, *, topk, capacity_factor, eps):
    """SwitchGate -- matches the torch module (f32)."""
    N = x.shape[0]
    logits = x.astype(jnp.float32) @ wg.astype(jnp.float32) + bg.astype(jnp.float32)[0]
    scores = jax.nn.softmax(logits, axis=-1)
    _, topi = lax.top_k(scores, topk)
    mask = jnp.zeros_like(scores).at[jnp.arange(N)[:, None], topi].set(1.0)
    masked = scores * mask
    denom = masked.sum(axis=0, keepdims=True) + eps       # global token sum
    capacity = float(int(capacity_factor * N))            # torch: int(cf * x.size(0))
    gate = masked / denom * capacity
    return jnp.where(jnp.isnan(gate), 0.0, gate)          # torch: NaN gate score -> 0


# --------------------------------------------------------------------------
# wrapper
# --------------------------------------------------------------------------
def switch_moe(x, params, *, topk, capacity_factor, eps=1e-6,
               compute_dtype=None, token_tile=512, mode=None):
    """SwitchMoE forward.  mode: None (auto) | "resident" | "streamed"."""
    N, dim = x.shape
    E, _, hidden = params["w1"].shape
    out_dtype = x.dtype

    auto_dtype = compute_dtype is None
    cdt = jnp.dtype(x.dtype) if auto_dtype else jnp.dtype(compute_dtype)

    # Lane-dense padding: full MXU feed + unmasked output stores.
    dim_p = _round_up(dim, 128)
    hid_p = _round_up(hidden, 128)

    # Generation-aware VMEM budget (~112 MiB on v5e/v6e, ~56 MiB on v7x).
    cap = _vmem_capacity_bytes()
    budget = max(min(cap - (8 << 20), cap * 7 // 8), 32 << 20)

    plan_mode, TN, cdt = _plan(N, dim_p, hid_p, E, cdt, out_dtype, budget,
                               token_tile, auto_dtype)
    if mode is None:
        mode = plan_mode

    # ---- gating hoisted out of the expert kernel ----
    gate = _switch_gate(x, params["wg"], params["bg"], topk=topk,
                        capacity_factor=capacity_factor, eps=eps)     # (N, E) f32

    Np = _round_up(N, TN)
    n_tiles = Np // TN
    gate_pad = jnp.pad(gate, ((0, Np - N), (0, 0)))
    gate_t = jnp.transpose(gate_pad)[:, :, None]                      # (E, Np, 1)
    # Per-(token-tile, expert) routing flags for the pl.when compute skip.
    flags = (gate_pad.reshape(n_tiles, TN, E) != 0).any(axis=1)
    flags = flags.astype(jnp.int32).reshape(-1)                       # (n_tiles*E,)

    x_c = jnp.pad(x, ((0, Np - N), (0, dim_p - dim))).astype(cdt)
    w1 = jnp.pad(params["w1"], ((0, 0), (0, dim_p - dim), (0, hid_p - hidden))).astype(cdt)
    b1 = jnp.pad(params["b1"], ((0, 0), (0, 0), (0, hid_p - hidden))).astype(jnp.float32)
    w2 = jnp.pad(params["w2"], ((0, 0), (0, hid_p - hidden), (0, dim_p - dim))).astype(cdt)
    b2 = jnp.pad(params["b2"], ((0, 0), (0, 0), (0, dim_p - dim))).astype(jnp.float32)

    if mode == "resident":
        grid = (n_tiles,)
        in_specs = [
            pl.BlockSpec((TN, dim_p), lambda t, f: (t, 0)),              # x tile
            pl.BlockSpec((E, TN, 1), lambda t, f: (0, t, 0)),            # gate cols (per tile)
            pl.BlockSpec((E, dim_p, hid_p), lambda t, f: (0, 0, 0)),     # W1 (all experts, once)
            pl.BlockSpec((E, 1, hid_p), lambda t, f: (0, 0, 0)),         # b1
            pl.BlockSpec((E, hid_p, dim_p), lambda t, f: (0, 0, 0)),     # W2
            pl.BlockSpec((E, 1, dim_p), lambda t, f: (0, 0, 0)),         # b2
        ]
        out_specs = pl.BlockSpec((TN, dim_p), lambda t, f: (t, 0))
        dims = ("parallel",)
        kern = _moe_resident_kernel
        est = _est_resident(TN, dim_p, hid_p, E, cdt, out_dtype)
    else:
        grid = (n_tiles, E)
        in_specs = [
            pl.BlockSpec((TN, dim_p), lambda t, e, f: (t, 0)),           # x tile
            pl.BlockSpec((E, TN, 1), lambda t, e, f: (0, t, 0)),         # gate cols (once/tile)
            pl.BlockSpec((None, dim_p, hid_p), lambda t, e, f: (e, 0, 0)),  # W1[e]
            pl.BlockSpec((None, 1, hid_p), lambda t, e, f: (e, 0, 0)),      # b1[e]
            pl.BlockSpec((None, hid_p, dim_p), lambda t, e, f: (e, 0, 0)),  # W2[e]
            pl.BlockSpec((None, 1, dim_p), lambda t, e, f: (e, 0, 0)),      # b2[e]
        ]
        out_specs = pl.BlockSpec((TN, dim_p), lambda t, e, f: (t, 0))
        dims = ("parallel", "arbitrary")
        kern = _moe_streamed_kernel
        est = _est_streamed(TN, dim_p, hid_p, E, cdt, out_dtype)

    vmem_limit = int(min(budget, max(est + est // 4, 32 << 20)))

    out = pl.pallas_call(
        kern,
        out_shape=jax.ShapeDtypeStruct((Np, dim_p), out_dtype),
        grid_spec=pltpu.PrefetchScalarGridSpec(
            num_scalar_prefetch=1,
            grid=grid,
            in_specs=in_specs,
            out_specs=out_specs,
            scratch_shapes=[pltpu.VMEM((TN, dim_p), jnp.float32)],
        ),
        compiler_params=pltpu.CompilerParams(
            dimension_semantics=dims,
            vmem_limit_bytes=vmem_limit),
    )(flags, x_c, gate_t, w1, b1, w2, b2)
    return out[:N, :dim]


# --------------------------------------------------------------------------
# pure-JAX reference (mirrors the PyTorch forward)
# --------------------------------------------------------------------------
def reference(x, params, *, topk, capacity_factor, eps=1e-6):
    N = x.shape[0]
    logits = x @ params["wg"] + params["bg"][0]
    scores = jax.nn.softmax(logits, axis=-1)
    _, topi = lax.top_k(scores, topk)
    mask = jnp.zeros_like(scores).at[jnp.arange(N)[:, None], topi].set(1.0)
    masked = scores * mask
    denom = masked.sum(axis=0, keepdims=True) + eps
    gate = masked / denom * float(int(capacity_factor * N))
    out = jnp.zeros_like(x)
    for e in range(params["w1"].shape[0]):
        h = jax.nn.relu(x @ params["w1"][e] + params["b1"][e, 0])
        y = h @ params["w2"][e] + params["b2"][e, 0]
        out = out + gate[:, e:e + 1] * y
    return out


if __name__ == "__main__":
    N, dim, hidden, E, topk, cf = 16, 32, 64, 4, 1, 1.0

    key = jax.random.PRNGKey(0)
    ks = jax.random.split(key, 8)
    params = {
        "wg": jax.random.normal(ks[0], (dim, E), jnp.float32) * 0.1,
        "bg": jax.random.normal(ks[1], (1, E), jnp.float32) * 0.1,
        "w1": jax.random.normal(ks[2], (E, dim, hidden), jnp.float32) * 0.1,
        "b1": jax.random.normal(ks[3], (E, 1, hidden), jnp.float32) * 0.1,
        "w2": jax.random.normal(ks[4], (E, hidden, dim), jnp.float32) * 0.1,
        "b2": jax.random.normal(ks[5], (E, 1, dim), jnp.float32) * 0.1,
    }
    x = jax.random.normal(ks[6], (N, dim), jnp.float32)

    ref = reference(x, params, topk=topk, capacity_factor=cf)

    # Auto plan (weights-resident here), f32 streaming: exact check.
    out = switch_moe(x, params, topk=topk, capacity_factor=cf)
    out = jax.block_until_ready(out)
    np.testing.assert_allclose(np.asarray(out), np.asarray(ref),
                               rtol=1e-4, atol=1e-4)

    # Forced streamed-experts path (used for large experts), f32: exact check.
    out_s = switch_moe(x, params, topk=topk, capacity_factor=cf, mode="streamed")
    out_s = jax.block_until_ready(out_s)
    np.testing.assert_allclose(np.asarray(out_s), np.asarray(ref),
                               rtol=1e-4, atol=1e-4)

    # bf16 streaming of x/W1/W2 (halves HBM weight traffic); f32 accumulate.
    out_bf16 = switch_moe(x, params, topk=topk, capacity_factor=cf,
                          compute_dtype=jnp.bfloat16)
    out_bf16 = jax.block_until_ready(out_bf16)
    np.testing.assert_allclose(np.asarray(out_bf16), np.asarray(ref),
                               rtol=5e-2, atol=1e-1)

    print("KERNEL_OK")
</pallas_src>

<mosaic_0001>
module attributes {stable_mosaic.version = 11 : i64} {
  func.func @_moe_resident_kernel(%arg0: i32, %arg1: memref<4xi32, #tpu.memory_space<smem>>, %arg2: memref<16x128xf32, #tpu.memory_space<vmem>>, %arg3: memref<4x16x1xf32, #tpu.memory_space<vmem>>, %arg4: memref<4x128x128xf32, #tpu.memory_space<vmem>>, %arg5: memref<4x1x128xf32, #tpu.memory_space<vmem>>, %arg6: memref<4x128x128xf32, #tpu.memory_space<vmem>>, %arg7: memref<4x1x128xf32, #tpu.memory_space<vmem>>, %arg8: memref<16x128xf32, #tpu.memory_space<vmem>>, %arg9: memref<16x128xf32, #tpu.memory_space<vmem>>) attributes {dimension_semantics = [#tpu.dimension_semantics<parallel>], iteration_bounds = array<i64: 1>, scalar_prefetch = 1 : i64, scratch_operands = 1 : i64, tpu.core_type = #tpu.core_type<tc>, window_params = [{transform_indices = @transform_0, window_bounds = array<i64: 16, 128>}, {transform_indices = @transform_1, window_bounds = array<i64: 4, 16, 1>}, {pipeline_mode = #tpu.pipeline_mode<synchronous>, transform_indices = @transform_2, window_bounds = array<i64: 4, 128, 128>}, {pipeline_mode = #tpu.pipeline_mode<synchronous>, transform_indices = @transform_3, window_bounds = array<i64: 4, 1, 128>}, {pipeline_mode = #tpu.pipeline_mode<synchronous>, transform_indices = @transform_4, window_bounds = array<i64: 4, 128, 128>}, {pipeline_mode = #tpu.pipeline_mode<synchronous>, transform_indices = @transform_5, window_bounds = array<i64: 4, 1, 128>}, {transform_indices = @transform_6, window_bounds = array<i64: 16, 128>}]} {
    %cst = arith.constant 0.000000e+00 : f32
    %0 = vector.broadcast %cst : f32 to vector<16x128xf32>
    %c0 = arith.constant 0 : index
    %c0_0 = arith.constant 0 : index
    %1 = vector.load %arg9[%c0, %c0_0] : memref<16x128xf32, #tpu.memory_space<vmem>>, vector<16x128xf32>
    tpu.vector_store %arg9[%c0, %c0_0], %0 {strides = array<i32>} : memref<16x128xf32, #tpu.memory_space<vmem>>, vector<16x128xf32>,
    %c0_1 = arith.constant 0 : index
    %c0_2 = arith.constant 0 : index
    %2 = vector.load %arg2[%c0_1, %c0_2] : memref<16x128xf32, #tpu.memory_space<vmem>>, vector<16x128xf32>
    %c4_i32 = arith.constant 4 : i32
    %3 = arith.muli %arg0, %c4_i32 : i32
    %c0_i32 = arith.constant 0 : i32
    %4 = arith.addi %3, %c0_i32 : i32
    %5 = arith.index_cast %4 : i32 to index
    %6 = memref.load %arg1[%5] : memref<4xi32, #tpu.memory_space<smem>>
    %c0_i32_3 = arith.constant 0 : i32
    %7 = arith.cmpi ne, %6, %c0_i32_3 : i32
    %8 = arith.extui %7 : i1 to i32
    %c0_i32_4 = arith.constant 0 : i32
    %9 = arith.cmpi ne, %8, %c0_i32_4 : i32
    scf.if %9 {
      %c0_18 = arith.constant 0 : index
      %c0_19 = arith.constant 0 : index
      %c0_20 = arith.constant 0 : index
      %33 = vector.load %arg4[%c0_18, %c0_19, %c0_20] : memref<4x128x128xf32, #tpu.memory_space<vmem>>, vector<1x128x128xf32>
      %34 = vector.shape_cast %33 : vector<1x128x128xf32> to vector<128x128xf32>
      %cst_21 = arith.constant dense<0.000000e+00> : vector<16x128xf32>
      %35 = tpu.matmul %2, %34, %cst_21 {dimension_numbers = #tpu.dot_dimension_numbers<[1], [0], [0], [1], [0, 0, 1, 1], [], []>} : vector<16x128xf32>, vector<128x128xf32>, vector<16x128xf32> -> vector<16x128xf32>
      %c0_22 = arith.constant 0 : index
      %c0_23 = arith.constant 0 : index
      %c0_24 = arith.constant 0 : index
      %36 = vector.load %arg5[%c0_22, %c0_23, %c0_24] : memref<4x1x128xf32, #tpu.memory_space<vmem>>, vector<1x1x128xf32>
      %37 = vector.shape_cast %36 : vector<1x1x128xf32> to vector<1x128xf32>
      %38 = vector.broadcast %37 : vector<1x128xf32> to vector<16x128xf32>
      %39 = arith.addf %35, %38 : vector<16x128xf32>
      %cst_25 = arith.constant 0.000000e+00 : f32
      %40 = vector.broadcast %cst_25 : f32 to vector<16x128xf32>
      %41 = arith.maximumf %39, %40 : vector<16x128xf32>
      %c0_26 = arith.constant 0 : index
      %c0_27 = arith.constant 0 : index
      %c0_28 = arith.constant 0 : index
      %42 = vector.load %arg6[%c0_26, %c0_27, %c0_28] : memref<4x128x128xf32, #tpu.memory_space<vmem>>, vector<1x128x128xf32>
      %43 = vector.shape_cast %42 : vector<1x128x128xf32> to vector<128x128xf32>
      %cst_29 = arith.constant dense<0.000000e+00> : vector<16x128xf32>
      %44 = tpu.matmul %41, %43, %cst_29 {dimension_numbers = #tpu.dot_dimension_numbers<[1], [0], [0], [1], [0, 0, 1, 1], [], []>} : vector<16x128xf32>, vector<128x128xf32>, vector<16x128xf32> -> vector<16x128xf32>
      %c0_30 = arith.constant 0 : index
      %c0_31 = arith.constant 0 : index
      %c0_32 = arith.constant 0 : index
      %45 = vector.load %arg7[%c0_30, %c0_31, %c0_32] : memref<4x1x128xf32, #tpu.memory_space<vmem>>, vector<1x1x128xf32>
      %46 = vector.shape_cast %45 : vector<1x1x128xf32> to vector<1x128xf32>
      %47 = vector.broadcast %46 : vector<1x128xf32> to vector<16x128xf32>
      %48 = arith.addf %44, %47 : vector<16x128xf32>
      %49 = arith.cmpf one, %48, %48 : vector<16x128xf32>
      %cst_33 = arith.constant 0.000000e+00 : f32
      %50 = vector.broadcast %cst_33 : f32 to vector<16x128xf32>
      %51 = arith.select %49, %50, %48 : vector<16x128xi1>, vector<16x128xf32>
      %c0_34 = arith.constant 0 : index
      %c0_35 = arith.constant 0 : index
      %52 = vector.load %arg9[%c0_34, %c0_35] : memref<16x128xf32, #tpu.memory_space<vmem>>, vector<16x128xf32>
      %c0_36 = arith.constant 0 : index
      %c0_37 = arith.constant 0 : index
      %c0_38 = arith.constant 0 : index
      %53 = vector.load %arg3[%c0_36, %c0_37, %c0_38] : memref<4x16x1xf32, #tpu.memory_space<vmem>>, vector<1x16x1xf32>
      %54 = vector.shape_cast %53 : vector<1x16x1xf32> to vector<16x1xf32>
      %55 = vector.broadcast %54 : vector<16x1xf32> to vector<16x128xf32>
      %56 = arith.mulf %55, %51 : vector<16x128xf32>
      %57 = arith.addf %52, %56 : vector<16x128xf32>
      %c0_39 = arith.constant 0 : index
      %c0_40 = arith.constant 0 : index
      %58 = vector.load %arg9[%c0_39, %c0_40] : memref<16x128xf32, #tpu.memory_space<vmem>>, vector<16x128xf32>
      tpu.vector_store %arg9[%c0_39, %c0_40], %57 {strides = array<i32>} : memref<16x128xf32, #tpu.memory_space<vmem>>, vector<16x128xf32>,
    } else {
    }
    %c4_i32_5 = arith.constant 4 : i32
    %10 = arith.muli %arg0, %c4_i32_5 : i32
    %c1_i32 = arith.constant 1 : i32
    %11 = arith.addi %10, %c1_i32 : i32
    %12 = arith.index_cast %11 : i32 to index
    %13 = memref.load %arg1[%12] : memref<4xi32, #tpu.memory_space<smem>>
    %c0_i32_6 = arith.constant 0 : i32
    %14 = arith.cmpi ne, %13, %c0_i32_6 : i32
    %15 = arith.extui %14 : i1 to i32
    %c0_i32_7 = arith.constant 0 : i32
    %16 = arith.cmpi ne, %15, %c0_i32_7 : i32
    scf.if %16 {
      %c1 = arith.constant 1 : index
      %c0_18 = arith.constant 0 : index
      %c0_19 = arith.constant 0 : index
      %33 = vector.load %arg4[%c1, %c0_18, %c0_19] : memref<4x128x128xf32, #tpu.memory_space<vmem>>, vector<1x128x128xf32>
      %34 = vector.shape_cast %33 : vector<1x128x128xf32> to vector<128x128xf32>
      %cst_20 = arith.constant dense<0.000000e+00> : vector<16x128xf32>
      %35 = tpu.matmul %2, %34, %cst_20 {dimension_numbers = #tpu.dot_dimension_numbers<[1], [0], [0], [1], [0, 0, 1, 1], [], []>} : vector<16x128xf32>, vector<128x128xf32>, vector<16x128xf32> -> vector<16x128xf32>
      %c1_21 = arith.constant 1 : index
      %c0_22 = arith.constant 0 : index
      %c0_23 = arith.constant 0 : index
      %36 = vector.load %arg5[%c1_21, %c0_22, %c0_23] : memref<4x1x128xf32, #tpu.memory_space<vmem>>, vector<1x1x128xf32>
      %37 = vector.shape_cast %36 : vector<1x1x128xf32> to vector<1x128xf32>
      %38 = vector.broadcast %37 : vector<1x128xf32> to vector<16x128xf32>
      %39 = arith.addf %35, %38 : vector<16x128xf32>
      %cst_24 = arith.constant 0.000000e+00 : f32
      %40 = vector.broadcast %cst_24 : f32 to vector<16x128xf32>
      %41 = arith.maximumf %39, %40 : vector<16x128xf32>
      %c1_25 = arith.constant 1 : index
      %c0_26 = arith.constant 0 : index
      %c0_27 = arith.constant 0 : index
      %42 = vector.load %arg6[%c1_25, %c0_26, %c0_27] : memref<4x128x128xf32, #tpu.memory_space<vmem>>, vector<1x128x128xf32>
      %43 = vector.shape_cast %42 : vector<1x128x128xf32> to vector<128x128xf32>
      %cst_28 = arith.constant dense<0.000000e+00> : vector<16x128xf32>
      %44 = tpu.matmul %41, %43, %cst_28 {dimension_numbers = #tpu.dot_dimension_numbers<[1], [0], [0], [1], [0, 0, 1, 1], [], []>} : vector<16x128xf32>, vector<128x128xf32>, vector<16x128xf32> -> vector<16x128xf32>
      %c1_29 = arith.constant 1 : index
      %c0_30 = arith.constant 0 : index
      %c0_31 = arith.constant 0 : index
      %45 = vector.load %arg7[%c1_29, %c0_30, %c0_31] : memref<4x1x128xf32, #tpu.memory_space<vmem>>, vector<1x1x128xf32>
      %46 = vector.shape_cast %45 : vector<1x1x128xf32> to vector<1x128xf32>
      %47 = vector.broadcast %46 : vector<1x128xf32> to vector<16x128xf32>
      %48 = arith.addf %44, %47 : vector<16x128xf32>
      %49 = arith.cmpf one, %48, %48 : vector<16x128xf32>
      %cst_32 = arith.constant 0.000000e+00 : f32
      %50 = vector.broadcast %cst_32 : f32 to vector<16x128xf32>
      %51 = arith.select %49, %50, %48 : vector<16x128xi1>, vector<16x128xf32>
      %c0_33 = arith.constant 0 : index
      %c0_34 = arith.constant 0 : index
      %52 = vector.load %arg9[%c0_33, %c0_34] : memref<16x128xf32, #tpu.memory_space<vmem>>, vector<16x128xf32>
      %c1_35 = arith.constant 1 : index
      %c0_36 = arith.constant 0 : index
      %c0_37 = arith.constant 0 : index
      %53 = vector.load %arg3[%c1_35, %c0_36, %c0_37] : memref<4x16x1xf32, #tpu.memory_space<vmem>>, vector<1x16x1xf32>
      %54 = vector.shape_cast %53 : vector<1x16x1xf32> to vector<16x1xf32>
      %55 = vector.broadcast %54 : vector<16x1xf32> to vector<16x128xf32>
      %56 = arith.mulf %55, %51 : vector<16x128xf32>
      %57 = arith.addf %52, %56 : vector<16x128xf32>
      %c0_38 = arith.constant 0 : index
      %c0_39 = arith.constant 0 : index
      %58 = vector.load %arg9[%c0_38, %c0_39] : memref<16x128xf32, #tpu.memory_space<vmem>>, vector<16x128xf32>
      tpu.vector_store %arg9[%c0_38, %c0_39], %57 {strides = array<i32>} : memref<16x128xf32, #tpu.memory_space<vmem>>, vector<16x128xf32>,
    } else {
    }
    %c4_i32_8 = arith.constant 4 : i32
    %17 = arith.muli %arg0, %c4_i32_8 : i32
    %c2_i32 = arith.constant 2 : i32
    %18 = arith.addi %17, %c2_i32 : i32
    %19 = arith.index_cast %18 : i32 to index
    %20 = memref.load %arg1[%19] : memref<4xi32, #tpu.memory_space<smem>>
    %c0_i32_9 = arith.constant 0 : i32
    %21 = arith.cmpi ne, %20, %c0_i32_9 : i32
    %22 = arith.extui %21 : i1 to i32
    %c0_i32_10 = arith.constant 0 : i32
    %23 = arith.cmpi ne, %22, %c0_i32_10 : i32
    scf.if %23 {
      %c2 = arith.constant 2 : index
      %c0_18 = arith.constant 0 : index
      %c0_19 = arith.constant 0 : index
      %33 = vector.load %arg4[%c2, %c0_18, %c0_19] : memref<4x128x128xf32, #tpu.memory_space<vmem>>, vector<1x128x128xf32>
      %34 = vector.shape_cast %33 : vector<1x128x128xf32> to vector<128x128xf32>
      %cst_20 = arith.constant dense<0.000000e+00> : vector<16x128xf32>
      %35 = tpu.matmul %2, %34, %cst_20 {dimension_numbers = #tpu.dot_dimension_numbers<[1], [0], [0], [1], [0, 0, 1, 1], [], []>} : vector<16x128xf32>, vector<128x128xf32>, vector<16x128xf32> -> vector<16x128xf32>
      %c2_21 = arith.constant 2 : index
      %c0_22 = arith.constant 0 : index
      %c0_23 = arith.constant 0 : index
      %36 = vector.load %arg5[%c2_21, %c0_22, %c0_23] : memref<4x1x128xf32, #tpu.memory_space<vmem>>, vector<1x1x128xf32>
      %37 = vector.shape_cast %36 : vector<1x1x128xf32> to vector<1x128xf32>
      %38 = vector.broadcast %37 : vector<1x128xf32> to vector<16x128xf32>
      %39 = arith.addf %35, %38 : vector<16x128xf32>
      %cst_24 = arith.constant 0.000000e+00 : f32
      %40 = vector.broadcast %cst_24 : f32 to vector<16x128xf32>
      %41 = arith.maximumf %39, %40 : vector<16x128xf32>
      %c2_25 = arith.constant 2 : index
      %c0_26 = arith.constant 0 : index
      %c0_27 = arith.constant 0 : index
      %42 = vector.load %arg6[%c2_25, %c0_26, %c0_27] : memref<4x128x128xf32, #tpu.memory_space<vmem>>, vector<1x128x128xf32>
      %43 = vector.shape_cast %42 : vector<1x128x128xf32> to vector<128x128xf32>
      %cst_28 = arith.constant dense<0.000000e+00> : vector<16x128xf32>
      %44 = tpu.matmul %41, %43, %cst_28 {dimension_numbers = #tpu.dot_dimension_numbers<[1], [0], [0], [1], [0, 0, 1, 1], [], []>} : vector<16x128xf32>, vector<128x128xf32>, vector<16x128xf32> -> vector<16x128xf32>
      %c2_29 = arith.constant 2 : index
      %c0_30 = arith.constant 0 : index
      %c0_31 = arith.constant 0 : index
      %45 = vector.load %arg7[%c2_29, %c0_30, %c0_31] : memref<4x1x128xf32, #tpu.memory_space<vmem>>, vector<1x1x128xf32>
      %46 = vector.shape_cast %45 : vector<1x1x128xf32> to vector<1x128xf32>
      %47 = vector.broadcast %46 : vector<1x128xf32> to vector<16x128xf32>
      %48 = arith.addf %44, %47 : vector<16x128xf32>
      %49 = arith.cmpf one, %48, %48 : vector<16x128xf32>
      %cst_32 = arith.constant 0.000000e+00 : f32
      %50 = vector.broadcast %cst_32 : f32 to vector<16x128xf32>
      %51 = arith.select %49, %50, %48 : vector<16x128xi1>, vector<16x128xf32>
      %c0_33 = arith.constant 0 : index
      %c0_34 = arith.constant 0 : index
      %52 = vector.load %arg9[%c0_33, %c0_34] : memref<16x128xf32, #tpu.memory_space<vmem>>, vector<16x128xf32>
      %c2_35 = arith.constant 2 : index
      %c0_36 = arith.constant 0 : index
      %c0_37 = arith.constant 0 : index
      %53 = vector.load %arg3[%c2_35, %c0_36, %c0_37] : memref<4x16x1xf32, #tpu.memory_space<vmem>>, vector<1x16x1xf32>
      %54 = vector.shape_cast %53 : vector<1x16x1xf32> to vector<16x1xf32>
      %55 = vector.broadcast %54 : vector<16x1xf32> to vector<16x128xf32>
      %56 = arith.mulf %55, %51 : vector<16x128xf32>
      %57 = arith.addf %52, %56 : vector<16x128xf32>
      %c0_38 = arith.constant 0 : index
      %c0_39 = arith.constant 0 : index
      %58 = vector.load %arg9[%c0_38, %c0_39] : memref<16x128xf32, #tpu.memory_space<vmem>>, vector<16x128xf32>
      tpu.vector_store %arg9[%c0_38, %c0_39], %57 {strides = array<i32>} : memref<16x128xf32, #tpu.memory_space<vmem>>, vector<16x128xf32>,
    } else {
    }
    %c4_i32_11 = arith.constant 4 : i32
    %24 = arith.muli %arg0, %c4_i32_11 : i32
    %c3_i32 = arith.constant 3 : i32
    %25 = arith.addi %24, %c3_i32 : i32
    %26 = arith.index_cast %25 : i32 to index
    %27 = memref.load %arg1[%26] : memref<4xi32, #tpu.memory_space<smem>>
    %c0_i32_12 = arith.constant 0 : i32
    %28 = arith.cmpi ne, %27, %c0_i32_12 : i32
    %29 = arith.extui %28 : i1 to i32
    %c0_i32_13 = arith.constant 0 : i32
    %30 = arith.cmpi ne, %29, %c0_i32_13 : i32
    scf.if %30 {
      %c3 = arith.constant 3 : index
      %c0_18 = arith.constant 0 : index
      %c0_19 = arith.constant 0 : index
      %33 = vector.load %arg4[%c3, %c0_18, %c0_19] : memref<4x128x128xf32, #tpu.memory_space<vmem>>, vector<1x128x128xf32>
      %34 = vector.shape_cast %33 : vector<1x128x128xf32> to vector<128x128xf32>
      %cst_20 = arith.constant dense<0.000000e+00> : vector<16x128xf32>
      %35 = tpu.matmul %2, %34, %cst_20 {dimension_numbers = #tpu.dot_dimension_numbers<[1], [0], [0], [1], [0, 0, 1, 1], [], []>} : vector<16x128xf32>, vector<128x128xf32>, vector<16x128xf32> -> vector<16x128xf32>
      %c3_21 = arith.constant 3 : index
      %c0_22 = arith.constant 0 : index
      %c0_23 = arith.constant 0 : index
      %36 = vector.load %arg5[%c3_21, %c0_22, %c0_23] : memref<4x1x128xf32, #tpu.memory_space<vmem>>, vector<1x1x128xf32>
      %37 = vector.shape_cast %36 : vector<1x1x128xf32> to vector<1x128xf32>
      %38 = vector.broadcast %37 : vector<1x128xf32> to vector<16x128xf32>
      %39 = arith.addf %35, %38 : vector<16x128xf32>
      %cst_24 = arith.constant 0.000000e+00 : f32
      %40 = vector.broadcast %cst_24 : f32 to vector<16x128xf32>
      %41 = arith.maximumf %39, %40 : vector<16x128xf32>
      %c3_25 = arith.constant 3 : index
      %c0_26 = arith.constant 0 : index
      %c0_27 = arith.constant 0 : index
      %42 = vector.load %arg6[%c3_25, %c0_26, %c0_27] : memref<4x128x128xf32, #tpu.memory_space<vmem>>, vector<1x128x128xf32>
      %43 = vector.shape_cast %42 : vector<1x128x128xf32> to vector<128x128xf32>
      %cst_28 = arith.constant dense<0.000000e+00> : vector<16x128xf32>
      %44 = tpu.matmul %41, %43, %cst_28 {dimension_numbers = #tpu.dot_dimension_numbers<[1], [0], [0], [1], [0, 0, 1, 1], [], []>} : vector<16x128xf32>, vector<128x128xf32>, vector<16x128xf32> -> vector<16x128xf32>
      %c3_29 = arith.constant 3 : index
      %c0_30 = arith.constant 0 : index
      %c0_31 = arith.constant 0 : index
      %45 = vector.load %arg7[%c3_29, %c0_30, %c0_31] : memref<4x1x128xf32, #tpu.memory_space<vmem>>, vector<1x1x128xf32>
      %46 = vector.shape_cast %45 : vector<1x1x128xf32> to vector<1x128xf32>
      %47 = vector.broadcast %46 : vector<1x128xf32> to vector<16x128xf32>
      %48 = arith.addf %44, %47 : vector<16x128xf32>
      %49 = arith.cmpf one, %48, %48 : vector<16x128xf32>
      %cst_32 = arith.constant 0.000000e+00 : f32
      %50 = vector.broadcast %cst_32 : f32 to vector<16x128xf32>
      %51 = arith.select %49, %50, %48 : vector<16x128xi1>, vector<16x128xf32>
      %c0_33 = arith.constant 0 : index
      %c0_34 = arith.constant 0 : index
      %52 = vector.load %arg9[%c0_33, %c0_34] : memref<16x128xf32, #tpu.memory_space<vmem>>, vector<16x128xf32>
      %c3_35 = arith.constant 3 : index
      %c0_36 = arith.constant 0 : index
      %c0_37 = arith.constant 0 : index
      %53 = vector.load %arg3[%c3_35, %c0_36, %c0_37] : memref<4x16x1xf32, #tpu.memory_space<vmem>>, vector<1x16x1xf32>
      %54 = vector.shape_cast %53 : vector<1x16x1xf32> to vector<16x1xf32>
      %55 = vector.broadcast %54 : vector<16x1xf32> to vector<16x128xf32>
      %56 = arith.mulf %55, %51 : vector<16x128xf32>
      %57 = arith.addf %52, %56 : vector<16x128xf32>
      %c0_38 = arith.constant 0 : index
      %c0_39 = arith.constant 0 : index
      %58 = vector.load %arg9[%c0_38, %c0_39] : memref<16x128xf32, #tpu.memory_space<vmem>>, vector<16x128xf32>
      tpu.vector_store %arg9[%c0_38, %c0_39], %57 {strides = array<i32>} : memref<16x128xf32, #tpu.memory_space<vmem>>, vector<16x128xf32>,
    } else {
    }
    %c0_14 = arith.constant 0 : index
    %c0_15 = arith.constant 0 : index
    %31 = vector.load %arg9[%c0_14, %c0_15] : memref<16x128xf32, #tpu.memory_space<vmem>>, vector<16x128xf32>
    %c0_16 = arith.constant 0 : index
    %c0_17 = arith.constant 0 : index
    %32 = vector.load %arg8[%c0_16, %c0_17] : memref<16x128xf32, #tpu.memory_space<vmem>>, vector<16x128xf32>
    tpu.vector_store %arg8[%c0_16, %c0_17], %31 {strides = array<i32>} : memref<16x128xf32, #tpu.memory_space<vmem>>, vector<16x128xf32>,
    return
  }
  func.func @transform_0(%arg0: i32, %arg1: memref<4xi32, #tpu.memory_space<smem>>) -> (i32, i32) {
    %c0_i32 = arith.constant 0 : i32
    %c0_i32_0 = arith.constant 0 : i32
    return %arg0, %c0_i32 : i32, i32
  }
  func.func @transform_1(%arg0: i32, %arg1: memref<4xi32, #tpu.memory_space<smem>>) -> (i32, i32, i32) {
    %c0_i32 = arith.constant 0 : i32
    %c0_i32_0 = arith.constant 0 : i32
    %c0_i32_1 = arith.constant 0 : i32
    return %c0_i32, %arg0, %c0_i32_0 : i32, i32, i32
  }
  func.func @transform_2(%arg0: i32, %arg1: memref<4xi32, #tpu.memory_space<smem>>) -> (i32, i32, i32) {
    %c0_i32 = arith.constant 0 : i32
    %c0_i32_0 = arith.constant 0 : i32
    %c0_i32_1 = arith.constant 0 : i32
    %c0_i32_2 = arith.constant 0 : i32
    return %c0_i32, %c0_i32_0, %c0_i32_1 : i32, i32, i32
  }
  func.func @transform_3(%arg0: i32, %arg1: memref<4xi32, #tpu.memory_space<smem>>) -> (i32, i32, i32) {
    %c0_i32 = arith.constant 0 : i32
    %c0_i32_0 = arith.constant 0 : i32
    %c0_i32_1 = arith.constant 0 : i32
    %c0_i32_2 = arith.constant 0 : i32
    return %c0_i32, %c0_i32_0, %c0_i32_1 : i32, i32, i32
  }
  func.func @transform_4(%arg0: i32, %arg1: memref<4xi32, #tpu.memory_space<smem>>) -> (i32, i32, i32) {
    %c0_i32 = arith.constant 0 : i32
    %c0_i32_0 = arith.constant 0 : i32
    %c0_i32_1 = arith.constant 0 : i32
    %c0_i32_2 = arith.constant 0 : i32
    return %c0_i32, %c0_i32_0, %c0_i32_1 : i32, i32, i32
  }
  func.func @transform_5(%arg0: i32, %arg1: memref<4xi32, #tpu.memory_space<smem>>) -> (i32, i32, i32) {
    %c0_i32 = arith.constant 0 : i32
    %c0_i32_0 = arith.constant 0 : i32
    %c0_i32_1 = arith.constant 0 : i32
    %c0_i32_2 = arith.constant 0 : i32
    return %c0_i32, %c0_i32_0, %c0_i32_1 : i32, i32, i32
  }
  func.func @transform_6(%arg0: i32, %arg1: memref<4xi32, #tpu.memory_space<smem>>) -> (i32, i32) {
    %c0_i32 = arith.constant 0 : i32
    %c0_i32_0 = arith.constant 0 : i32
    return %arg0, %c0_i32 : i32, i32
  }
}

</mosaic_0001>

<llo_original>
// kernel: tpu_custom_call.1
$region0: #{tpu_custom_call.1}
  #allocation0 [shape = 'u32[]', space=smem, size = 0x4, offset = 0x4, fixed_abs, tag = 'smem constant byte address 0x4 - core index']
  #allocation1 [shape = 'u32[72,128]{1,0:T(1,128)}', space=vmem, size = 0x9000, scoped, tag = 'internal scratch']
  #allocation2 [shape = 'f32[16,128]{1,0:T(8,128)}', space=vmem, size = 0x2000, scoped, tag = 'scratch operand']
  #allocation3 [shape = 's32[1]{0}', space=sflag, size = 0x4, scoped, tag = 'scoped memory for tpu_custom_call.1']
  #allocation4 [shape = 'u8[512]{0}', space=smem, size = 0x200, scoped, tag = 'prefetched SMEM operand 0']
  %s0 = inlined_call_operand.vmem [shape: s32[4], index: 0, kind: input, shape index: {}]
  %s1 = inlined_call_operand.vmem [shape: f32[16,128], index: 1, kind: input, shape index: {}]
  %s2 = inlined_call_operand.vmem [shape: f32[4,16,1], index: 2, kind: input, shape index: {}]
  %s3 = inlined_call_operand.hbm [shape: f32[4,128,128], index: 3, kind: input, shape index: {}]
  %s4 = inlined_call_operand.vmem [shape: f32[4,1,128], index: 4, kind: input, shape index: {}]
  %s5 = inlined_call_operand.hbm [shape: f32[4,128,128], index: 5, kind: input, shape index: {}]
  %s6 = inlined_call_operand.vmem [shape: f32[4,1,128], index: 6, kind: input, shape index: {}]
  %s7 = inlined_call_operand.hbm [shape: f32[16,128], index: 7, kind: output, shape index: {}]
  %s8 = sld [smem:[#allocation0]]
  $region58: #{tpu_custom_call.1} parent=0
    _
  %s10 = ssub.s32 1, %s8
  %s11 = scalar_select 0, %s10, %s8
  %s13 = sshll.u32 %s0, 4
  %s14 = int_to_ptr.vmem [resolvable:$true] %s13
  %16 = dma.vmem_to_smem %s14, 16, [#allocation4], [#allocation3]
  %18 = dma.done [#allocation3], 16
  %19 = sfence
  $region1: #{tpu_custom_call.1} parent=0
    #allocation5 [shape = 'u8[262144]{0}', space=vmem, size = 0x40000, scoped, tag = 'input window, operand 3, single buffered']
    #allocation6 [shape = 's32[1]{0}', space=sflag, size = 0x4, scoped, tag = 'scoped memory for tpu_custom_call.1']
    #allocation7 [shape = 's32[1]{0}', space=sflag, size = 0x4, scoped, tag = 'scoped memory for tpu_custom_call.1']
    #allocation8 [shape = 'u8[262144]{0}', space=vmem, size = 0x40000, scoped, tag = 'input window, operand 5, single buffered']
    #allocation9 [shape = 's32[1]{0}', space=sflag, size = 0x4, scoped, tag = 'scoped memory for tpu_custom_call.1']
    #allocation10 [shape = 'u8[8192]{0}', space=vmem, size = 0x2000, scoped, tag = 'output window, operand 0, single buffered']
    %20 = vsyncpa [#allocation6], 0
    %21 = vsyncpa [#allocation9], 0
    %22 = vsyncpa [#allocation7], 0
    // Predicated region
    $region2: #{tpu_custom_call.1} parent=1 // pred_check
      _
    $region3: #{tpu_custom_call.1} parent=1 // pred_check_branch
      %24 = sbr.rel (0) target = $region5
    $region4: #{tpu_custom_call.1} parent=1 // pred_region
      _
    $region5: #{tpu_custom_call.1} parent=1 // pred_fallthru
      _
    // Predicated region
    $region6: #{tpu_custom_call.1} parent=1 // pred_check
      _
    $region7: #{tpu_custom_call.1} parent=1 // pred_check_branch
      %26 = sbr.rel (0) target = $region9
    $region8: #{tpu_custom_call.1} parent=1 // pred_region
      _
    $region9: #{tpu_custom_call.1} parent=1 // pred_fallthru
      _
    // Predicated region
    $region10: #{tpu_custom_call.1} parent=1 // pred_check
      _
    $region11: #{tpu_custom_call.1} parent=1 // pred_check_branch
      %28 = sbr.rel (0) target = $region13
    $region12: #{tpu_custom_call.1} parent=1 // pred_region
      %30 = vsyncadd [#allocation6], 0
      %s31 = sshll.u32 %s3, 4
      %s32 = int_to_ptr.hbm [resolvable:$true] %s31
      %s33 = sshll.u32 [#allocation5], 4
      %s34 = int_to_ptr.vmem [resolvable:$true] %s33
      %39 = dma.hbm_to_vmem [thread:$0]  %s32, 8192, %s34, [#allocation6], 128, 128, 8
    $region13: #{tpu_custom_call.1} parent=1 // pred_fallthru
      _
    // Predicated region
    $region14: #{tpu_custom_call.1} parent=1 // pred_check
      _
    $region15: #{tpu_custom_call.1} parent=1 // pred_check_branch
      %41 = sbr.rel (0) target = $region17
    $region16: #{tpu_custom_call.1} parent=1 // pred_region
      _
    $region17: #{tpu_custom_call.1} parent=1 // pred_fallthru
      _
    // Predicated region
    $region18: #{tpu_custom_call.1} parent=1 // pred_check
      _
    $region19: #{tpu_custom_call.1} parent=1 // pred_check_branch
      %43 = sbr.rel (0) target = $region21
    $region20: #{tpu_custom_call.1} parent=1 // pred_region
      %45 = vsyncadd [#allocation9], 0
      %s46 = sshll.u32 %s5, 4
      %s47 = int_to_ptr.hbm [resolvable:$true] %s46
      %s48 = sshll.u32 [#allocation8], 4
      %s49 = int_to_ptr.vmem [resolvable:$true] %s48
      %54 = dma.hbm_to_vmem [thread:$0]  %s47, 8192, %s49, [#allocation9], 128, 128, 8
    $region21: #{tpu_custom_call.1} parent=1 // pred_fallthru
      _
    // Predicated region
    $region22: #{tpu_custom_call.1} parent=1 // pred_check
      _
    $region23: #{tpu_custom_call.1} parent=1 // pred_check_branch
      %56 = sbr.rel (0) target = $region25
    $region24: #{tpu_custom_call.1} parent=1 // pred_region
      _
    $region25: #{tpu_custom_call.1} parent=1 // pred_fallthru
      _
    // Predicated region
    $region26: #{tpu_custom_call.1} parent=1 // pred_check
      _
    $region27: #{tpu_custom_call.1} parent=1 // pred_check_branch
      %58 = sbr.rel (0) target = $region29
    $region28: #{tpu_custom_call.1} parent=1 // pred_region
      %60 = dma.done [#allocation6], 8192
    $region29: #{tpu_custom_call.1} parent=1 // pred_fallthru
      _
    // Predicated region
    $region30: #{tpu_custom_call.1} parent=1 // pred_check
      _
    $region31: #{tpu_custom_call.1} parent=1 // pred_check_branch
      %62 = sbr.rel (0) target = $region33
    $region32: #{tpu_custom_call.1} parent=1 // pred_region
      %64 = dma.done [#allocation9], 8192
    $region33: #{tpu_custom_call.1} parent=1 // pred_fallthru
      _
    %65 = vst [vmem:[#allocation2] sm:$0xff] 0.0
    %66 = vst [vmem:[#allocation2 + $0x8] sm:$0xff] 0.0
    %v67 = vld [vmem:[%s1] sm:$0xff]
    %v68 = vld [vmem:[%s1 + $0x8] sm:$0xff]
    %s69 = smul.u32 0, 4
    %s70 = sld [smem:[#allocation4 + %s69]]
    %p71 = scmp.ne.s32.totalorder %s70, 0
    // Predicated region
    $region34: #{tpu_custom_call.1} parent=1 // pred_check
      %p72 = pneg %p71
    $region35: #{tpu_custom_call.1} parent=1 // pred_check_branch
      %74 = sbr.rel (%p72) target = $region37
    $region36: #{tpu_custom_call.1} parent=1 // pred_region
      %v75 = vld [vmem:[#allocation5] sm:$0xff]
      %v76 = vld [vmem:[#allocation5 + $0x8] sm:$0xff]
      %v77 = vld [vmem:[#allocation5 + $0x10] sm:$0xff]
      %v78 = vld [vmem:[#allocation5 + $0x18] sm:$0xff]
      %v79 = vld [vmem:[#allocation5 + $0x20] sm:$0xff]
      %v80 = vld [vmem:[#allocation5 + $0x28] sm:$0xff]
      %v81 = vld [vmem:[#allocation5 + $0x30] sm:$0xff]
      %v82 = vld [vmem:[#allocation5 + $0x38] sm:$0xff]
      %v83 = vld [vmem:[#allocation5 + $0x40] sm:$0xff]
      %v84 = vld [vmem:[#allocation5 + $0x48] sm:$0xff]
      %v85 = vld [vmem:[#allocation5 + $0x50] sm:$0xff]
      %v86 = vld [vmem:[#allocation5 + $0x58] sm:$0xff]
      %v87 = vld [vmem:[#allocation5 + $0x60] sm:$0xff]
      %v88 = vld [vmem:[#allocation5 + $0x68] sm:$0xff]
      %v89 = vld [vmem:[#allocation5 + $0x70] sm:$0xff]
      %v90 = vld [vmem:[#allocation5 + $0x78] sm:$0xff]
      %v91 = vld [vmem:[%s4] sm:$0x1]
      %v93 = vperm.slane %v91, 0
      %95 = vmatpush.msra.mxu0 %v90
      %96 = vmatpush.msra.mxu0 %v89
      %97 = vmatpush.msra.mxu0 %v88
      %98 = vmatpush.msra.mxu0 %v87
      %99 = vmatpush.msra.mxu0 %v86
      %100 = vmatpush.msra.mxu0 %v85
      %101 = vmatpush.msra.mxu0 %v84
      %102 = vmatpush.msra.mxu0 %v83
      %103 = vmatpush.msra.mxu0 %v82
      %104 = vmatpush.msra.mxu0 %v81
      %105 = vmatpush.msra.mxu0 %v80
      %106 = vmatpush.msra.mxu0 %v79
      %107 = vmatpush.msra.mxu0 %v78
      %108 = vmatpush.msra.mxu0 %v77
      %109 = vmatpush.msra.mxu0 %v76
      %110 = vmatpush.msra.mxu0 %v75
      %111 = vmatmul.f32.gmra.mxu0 %v67
      %v112 = vpop.f32.mrf.mxu0
      %v113 = vadd.f32 %v93, %v112
      %114 = vmatmul.f32.gmra.mxu0 %v68
      %v115 = vpop.f32.mrf.mxu0
      %v116 = vadd.f32 %v93, %v115
      %117 = vdwg.mxu0
      %v118 = vmax.f32 %v113, 0.0
      %v119 = vmax.f32 %v116, 0.0
      %v120 = vld [vmem:[#allocation8] sm:$0xff]
      %v121 = vld [vmem:[#allocation8 + $0x8] sm:$0xff]
      %v122 = vld [vmem:[#allocation8 + $0x10] sm:$0xff]
      %v123 = vld [vmem:[#allocation8 + $0x18] sm:$0xff]
      %v124 = vld [vmem:[#allocation8 + $0x20] sm:$0xff]
      %v125 = vld [vmem:[#allocation8 + $0x28] sm:$0xff]
      %v126 = vld [vmem:[#allocation8 + $0x30] sm:$0xff]
      %v127 = vld [vmem:[#allocation8 + $0x38] sm:$0xff]
      %v128 = vld [vmem:[#allocation8 + $0x40] sm:$0xff]
      %v129 = vld [vmem:[#allocation8 + $0x48] sm:$0xff]
      %v130 = vld [vmem:[#allocation8 + $0x50] sm:$0xff]
      %v131 = vld [vmem:[#allocation8 + $0x58] sm:$0xff]
      %v132 = vld [vmem:[#allocation8 + $0x60] sm:$0xff]
      %v133 = vld [vmem:[#allocation8 + $0x68] sm:$0xff]
      %v134 = vld [vmem:[#allocation8 + $0x70] sm:$0xff]
      %v135 = vld [vmem:[#allocation8 + $0x78] sm:$0xff]
      %v136 = vld [vmem:[%s6] sm:$0x1]
      %v138 = vperm.slane %v136, 0
      %140 = vmatpush.msra.mxu0 %v135
      %141 = vmatpush.msra.mxu0 %v134
      %142 = vmatpush.msra.mxu0 %v133
      %143 = vmatpush.msra.mxu0 %v132
      %144 = vmatpush.msra.mxu0 %v131
      %145 = vmatpush.msra.mxu0 %v130
      %146 = vmatpush.msra.mxu0 %v129
      %147 = vmatpush.msra.mxu0 %v128
      %148 = vmatpush.msra.mxu0 %v127
      %149 = vmatpush.msra.mxu0 %v126
      %150 = vmatpush.msra.mxu0 %v125
      %151 = vmatpush.msra.mxu0 %v124
      %152 = vmatpush.msra.mxu0 %v123
      %153 = vmatpush.msra.mxu0 %v122
      %154 = vmatpush.msra.mxu0 %v121
      %155 = vmatpush.msra.mxu0 %v120
      %156 = vmatmul.f32.gmra.mxu0 %v118
      %v157 = vpop.f32.mrf.mxu0
      %v158 = vadd.f32 %v138, %v157
      %159 = vmatmul.f32.gmra.mxu0 %v119
      %v160 = vpop.f32.mrf.mxu0
      %v161 = vadd.f32 %v138, %v160
      %162 = vdwg.mxu0
      %vm163 = vcmp.ne.f32.partialorder %v158, %v158
      %vm164 = vcmp.ne.f32.partialorder %v161, %v161
      %v165 = vsel %vm163, 0.0, %v158
      %v166 = vsel %vm164, 0.0, %v161
      %v167 = vld [vmem:[#allocation2] sm:$0xff]
      %v168 = vld [vmem:[#allocation2 + $0x8] sm:$0xff]
      %v169 = vld [vmem:[%s2] sm:$0xff]
      %v170 = vld [vmem:[%s2 + $0x8] sm:$0xff]
      %172 = vset.pattern.permute.xlu0 0
      %173 = vperm.xlu0 %172, %v169
      %v174 = vpop.permute.xlu0 %173
      %177 = vset.pattern.permute.xlu0 0
      %178 = vperm.xlu0 %177, %v170
      %v179 = vpop.permute.xlu0 %178
      %v181 = vmul.f32 %v174, %v165
      %v182 = vmul.f32 %v179, %v166
      %v183 = vadd.f32 %v167, %v181
      %v184 = vadd.f32 %v168, %v182
      %185 = vst [vmem:[#allocation2] sm:$0xff] %v183
      %186 = vst [vmem:[#allocation2 + $0x8] sm:$0xff] %v184
    $region37: #{tpu_custom_call.1} parent=1 // pred_fallthru
      _
    %s187 = sadd.s32 %s69, 1
    %s188 = sld [smem:[#allocation4 + %s187]]
    %p189 = scmp.ne.s32.totalorder %s188, 0
    // Predicated region
    $region38: #{tpu_custom_call.1} parent=1 // pred_check
      %p190 = pneg %p189
    $region39: #{tpu_custom_call.1} parent=1 // pred_check_branch
      %192 = sbr.rel (%p190) target = $region41
    $region40: #{tpu_custom_call.1} parent=1 // pred_region
      %s193 = scalar_lea.vmem [#allocation5], 128
      %v194 = vld [vmem:[%s193] sm:$0xff]
      %v195 = vld [vmem:[%s193 + $0x8] sm:$0xff]
      %v196 = vld [vmem:[%s193 + $0x10] sm:$0xff]
      %v197 = vld [vmem:[%s193 + $0x18] sm:$0xff]
      %v198 = vld [vmem:[%s193 + $0x20] sm:$0xff]
      %v199 = vld [vmem:[%s193 + $0x28] sm:$0xff]
      %v200 = vld [vmem:[%s193 + $0x30] sm:$0xff]
      %v201 = vld [vmem:[%s193 + $0x38] sm:$0xff]
      %v202 = vld [vmem:[%s193 + $0x40] sm:$0xff]
      %v203 = vld [vmem:[%s193 + $0x48] sm:$0xff]
      %v204 = vld [vmem:[%s193 + $0x50] sm:$0xff]
      %v205 = vld [vmem:[%s193 + $0x58] sm:$0xff]
      %v206 = vld [vmem:[%s193 + $0x60] sm:$0xff]
      %v207 = vld [vmem:[%s193 + $0x68] sm:$0xff]
      %v208 = vld [vmem:[%s193 + $0x70] sm:$0xff]
      %v209 = vld [vmem:[%s193 + $0x78] sm:$0xff]
      %s210 = scalar_lea.vmem %s4, 1
      %v211 = vld [vmem:[%s210] sm:$0x1]
      %v213 = vperm.slane %v211, 0
      %215 = vmatpush.msra.mxu0 %v209
      %216 = vmatpush.msra.mxu0 %v208
      %217 = vmatpush.msra.mxu0 %v207
      %218 = vmatpush.msra.mxu0 %v206
      %219 = vmatpush.msra.mxu0 %v205
      %220 = vmatpush.msra.mxu0 %v204
      %221 = vmatpush.msra.mxu0 %v203
      %222 = vmatpush.msra.mxu0 %v202
      %223 = vmatpush.msra.mxu0 %v201
      %224 = vmatpush.msra.mxu0 %v200
      %225 = vmatpush.msra.mxu0 %v199
      %226 = vmatpush.msra.mxu0 %v198
      %227 = vmatpush.msra.mxu0 %v197
      %228 = vmatpush.msra.mxu0 %v196
      %229 = vmatpush.msra.mxu0 %v195
      %230 = vmatpush.msra.mxu0 %v194
      %231 = vmatmul.f32.gmra.mxu0 %v67
      %v232 = vpop.f32.mrf.mxu0
      %v233 = vadd.f32 %v213, %v232
      %234 = vmatmul.f32.gmra.mxu0 %v68
      %v235 = vpop.f32.mrf.mxu0
      %v236 = vadd.f32 %v213, %v235
      %237 = vdwg.mxu0
      %v238 = vmax.f32 %v233, 0.0
      %v239 = vmax.f32 %v236, 0.0
      %s240 = scalar_lea.vmem [#allocation8], 128
      %v241 = vld [vmem:[%s240] sm:$0xff]
      %v242 = vld [vmem:[%s240 + $0x8] sm:$0xff]
      %v243 = vld [vmem:[%s240 + $0x10] sm:$0xff]
      %v244 = vld [vmem:[%s240 + $0x18] sm:$0xff]
      %v245 = vld [vmem:[%s240 + $0x20] sm:$0xff]
      %v246 = vld [vmem:[%s240 + $0x28] sm:$0xff]
      %v247 = vld [vmem:[%s240 + $0x30] sm:$0xff]
      %v248 = vld [vmem:[%s240 + $0x38] sm:$0xff]
      %v249 = vld [vmem:[%s240 + $0x40] sm:$0xff]
      %v250 = vld [vmem:[%s240 + $0x48] sm:$0xff]
      %v251 = vld [vmem:[%s240 + $0x50] sm:$0xff]
      %v252 = vld [vmem:[%s240 + $0x58] sm:$0xff]
      %v253 = vld [vmem:[%s240 + $0x60] sm:$0xff]
      %v254 = vld [vmem:[%s240 + $0x68] sm:$0xff]
      %v255 = vld [vmem:[%s240 + $0x70] sm:$0xff]
      %v256 = vld [vmem:[%s240 + $0x78] sm:$0xff]
      %s257 = scalar_lea.vmem %s6, 1
      %v258 = vld [vmem:[%s257] sm:$0x1]
      %v260 = vperm.slane %v258, 0
      %262 = vmatpush.msra.mxu0 %v256
      %263 = vmatpush.msra.mxu0 %v255
      %264 = vmatpush.msra.mxu0 %v254
      %265 = vmatpush.msra.mxu0 %v253
      %266 = vmatpush.msra.mxu0 %v252
      %267 = vmatpush.msra.mxu0 %v251
      %268 = vmatpush.msra.mxu0 %v250
      %269 = vmatpush.msra.mxu0 %v249
      %270 = vmatpush.msra.mxu0 %v248
      %271 = vmatpush.msra.mxu0 %v247
      %272 = vmatpush.msra.mxu0 %v246
      %273 = vmatpush.msra.mxu0 %v245
      %274 = vmatpush.msra.mxu0 %v244
      %275 = vmatpush.msra.mxu0 %v243
      %276 = vmatpush.msra.mxu0 %v242
      %277 = vmatpush.msra.mxu0 %v241
      %278 = vmatmul.f32.gmra.mxu0 %v238
      %v279 = vpop.f32.mrf.mxu0
      %v280 = vadd.f32 %v260, %v279
      %281 = vmatmul.f32.gmra.mxu0 %v239
      %v282 = vpop.f32.mrf.mxu0
      %v283 = vadd.f32 %v260, %v282
      %284 = vdwg.mxu0
      %vm285 = vcmp.ne.f32.partialorder %v280, %v280
      %vm286 = vcmp.ne.f32.partialorder %v283, %v283
      %v287 = vsel %vm285, 0.0, %v280
      %v288 = vsel %vm286, 0.0, %v283
      %v289 = vld [vmem:[#allocation2] sm:$0xff]
      %v290 = vld [vmem:[#allocation2 + $0x8] sm:$0xff]
      %s291 = scalar_lea.vmem %s2, 16
      %v292 = vld [vmem:[%s291] sm:$0xff]
      %v293 = vld [vmem:[%s291 + $0x8] sm:$0xff]
      %295 = vset.pattern.permute.xlu0 0
      %296 = vperm.xlu0 %295, %v292
      %v297 = vpop.permute.xlu0 %296
      %300 = vset.pattern.permute.xlu0 0
      %301 = vperm.xlu0 %300, %v293
      %v302 = vpop.permute.xlu0 %301
      %v304 = vmul.f32 %v297, %v287
      %v305 = vmul.f32 %v302, %v288
      %v306 = vadd.f32 %v289, %v304
      %v307 = vadd.f32 %v290, %v305
      %308 = vst [vmem:[#allocation2] sm:$0xff] %v306
      %309 = vst [vmem:[#allocation2 + $0x8] sm:$0xff] %v307
    $region41: #{tpu_custom_call.1} parent=1 // pred_fallthru
      _
    %s310 = sadd.s32 %s69, 2
    %s311 = sld [smem:[#allocation4 + %s310]]
    %p312 = scmp.ne.s32.totalorder %s311, 0
    // Predicated region
    $region42: #{tpu_custom_call.1} parent=1 // pred_check
      %p313 = pneg %p312
    $region43: #{tpu_custom_call.1} parent=1 // pred_check_branch
      %315 = sbr.rel (%p313) target = $region45
    $region44: #{tpu_custom_call.1} parent=1 // pred_region
      %s316 = scalar_lea.vmem [#allocation5], 256
      %v317 = vld [vmem:[%s316] sm:$0xff]
      %v318 = vld [vmem:[%s316 + $0x8] sm:$0xff]
      %v319 = vld [vmem:[%s316 + $0x10] sm:$0xff]
      %v320 = vld [vmem:[%s316 + $0x18] sm:$0xff]
      %v321 = vld [vmem:[%s316 + $0x20] sm:$0xff]
      %v322 = vld [vmem:[%s316 + $0x28] sm:$0xff]
      %v323 = vld [vmem:[%s316 + $0x30] sm:$0xff]
      %v324 = vld [vmem:[%s316 + $0x38] sm:$0xff]
      %v325 = vld [vmem:[%s316 + $0x40] sm:$0xff]
      %v326 = vld [vmem:[%s316 + $0x48] sm:$0xff]
      %v327 = vld [vmem:[%s316 + $0x50] sm:$0xff]
      %v328 = vld [vmem:[%s316 + $0x58] sm:$0xff]
      %v329 = vld [vmem:[%s316 + $0x60] sm:$0xff]
      %v330 = vld [vmem:[%s316 + $0x68] sm:$0xff]
      %v331 = vld [vmem:[%s316 + $0x70] sm:$0xff]
      %v332 = vld [vmem:[%s316 + $0x78] sm:$0xff]
      %s333 = scalar_lea.vmem %s4, 2
      %v334 = vld [vmem:[%s333] sm:$0x1]
      %v336 = vperm.slane %v334, 0
      %338 = vmatpush.msra.mxu0 %v332
      %339 = vmatpush.msra.mxu0 %v331
      %340 = vmatpush.msra.mxu0 %v330
      %341 = vmatpush.msra.mxu0 %v329
      %342 = vmatpush.msra.mxu0 %v328
      %343 = vmatpush.msra.mxu0 %v327
      %344 = vmatpush.msra.mxu0 %v326
      %345 = vmatpush.msra.mxu0 %v325
      %346 = vmatpush.msra.mxu0 %v324
      %347 = vmatpush.msra.mxu0 %v323
      %348 = vmatpush.msra.mxu0 %v322
      %349 = vmatpush.msra.mxu0 %v321
      %350 = vmatpush.msra.mxu0 %v320
      %351 = vmatpush.msra.mxu0 %v319
      %352 = vmatpush.msra.mxu0 %v318
      %353 = vmatpush.msra.mxu0 %v317
      %354 = vmatmul.f32.gmra.mxu0 %v67
      %v355 = vpop.f32.mrf.mxu0
      %v356 = vadd.f32 %v336, %v355
      %357 = vmatmul.f32.gmra.mxu0 %v68
      %v358 = vpop.f32.mrf.mxu0
      %v359 = vadd.f32 %v336, %v358
      %360 = vdwg.mxu0
      %v361 = vmax.f32 %v356, 0.0
      %v362 = vmax.f32 %v359, 0.0
      %s363 = scalar_lea.vmem [#allocation8], 256
      %v364 = vld [vmem:[%s363] sm:$0xff]
      %v365 = vld [vmem:[%s363 + $0x8] sm:$0xff]
      %v366 = vld [vmem:[%s363 + $0x10] sm:$0xff]
      %v367 = vld [vmem:[%s363 + $0x18] sm:$0xff]
      %v368 = vld [vmem:[%s363 + $0x20] sm:$0xff]
      %v369 = vld [vmem:[%s363 + $0x28] sm:$0xff]
      %v370 = vld [vmem:[%s363 + $0x30] sm:$0xff]
      %v371 = vld [vmem:[%s363 + $0x38] sm:$0xff]
      %v372 = vld [vmem:[%s363 + $0x40] sm:$0xff]
      %v373 = vld [vmem:[%s363 + $0x48] sm:$0xff]
      %v374 = vld [vmem:[%s363 + $0x50] sm:$0xff]
      %v375 = vld [vmem:[%s363 + $0x58] sm:$0xff]
      %v376 = vld [vmem:[%s363 + $0x60] sm:$0xff]
      %v377 = vld [vmem:[%s363 + $0x68] sm:$0xff]
      %v378 = vld [vmem:[%s363 + $0x70] sm:$0xff]
      %v379 = vld [vmem:[%s363 + $0x78] sm:$0xff]
      %s380 = scalar_lea.vmem %s6, 2
      %v381 = vld [vmem:[%s380] sm:$0x1]
      %v383 = vperm.slane %v381, 0
      %385 = vmatpush.msra.mxu0 %v379
      %386 = vmatpush.msra.mxu0 %v378
      %387 = vmatpush.msra.mxu0 %v377
      %388 = vmatpush.msra.mxu0 %v376
      %389 = vmatpush.msra.mxu0 %v375
      %390 = vmatpush.msra.mxu0 %v374
      %391 = vmatpush.msra.mxu0 %v373
      %392 = vmatpush.msra.mxu0 %v372
      %393 = vmatpush.msra.mxu0 %v371
      %394 = vmatpush.msra.mxu0 %v370
      %395 = vmatpush.msra.mxu0 %v369
      %396 = vmatpush.msra.mxu0 %v368
      %397 = vmatpush.msra.mxu0 %v367
      %398 = vmatpush.msra.mxu0 %v366
      %399 = vmatpush.msra.mxu0 %v365
      %400 = vmatpush.msra.mxu0 %v364
      %401 = vmatmul.f32.gmra.mxu0 %v361
      %v402 = vpop.f32.mrf.mxu0
      %v403 = vadd.f32 %v383, %v402
      %404 = vmatmul.f32.gmra.mxu0 %v362
      %v405 = vpop.f32.mrf.mxu0
      %v406 = vadd.f32 %v383, %v405
      %407 = vdwg.mxu0
      %vm408 = vcmp.ne.f32.partialorder %v403, %v403
      %vm409 = vcmp.ne.f32.partialorder %v406, %v406
      %v410 = vsel %vm408, 0.0, %v403
      %v411 = vsel %vm409, 0.0, %v406
      %v412 = vld [vmem:[#allocation2] sm:$0xff]
      %v413 = vld [vmem:[#allocation2 + $0x8] sm:$0xff]
      %s414 = scalar_lea.vmem %s2, 32
      %v415 = vld [vmem:[%s414] sm:$0xff]
      %v416 = vld [vmem:[%s414 + $0x8] sm:$0xff]
      %418 = vset.pattern.permute.xlu0 0
      %419 = vperm.xlu0 %418, %v415
      %v420 = vpop.permute.xlu0 %419
      %423 = vset.pattern.permute.xlu0 0
      %424 = vperm.xlu0 %423, %v416
      %v425 = vpop.permute.xlu0 %424
      %v427 = vmul.f32 %v420, %v410
      %v428 = vmul.f32 %v425, %v411
      %v429 = vadd.f32 %v412, %v427
      %v430 = vadd.f32 %v413, %v428
      %431 = vst [vmem:[#allocation2] sm:$0xff] %v429
      %432 = vst [vmem:[#allocation2 + $0x8] sm:$0xff] %v430
    $region45: #{tpu_custom_call.1} parent=1 // pred_fallthru
      _
    %s433 = sadd.s32 %s69, 3
    %s434 = sld [smem:[#allocation4 + %s433]]
    %p435 = scmp.ne.s32.totalorder %s434, 0
    // Predicated region
    $region46: #{tpu_custom_call.1} parent=1 // pred_check
      %p436 = pneg %p435
    $region47: #{tpu_custom_call.1} parent=1 // pred_check_branch
      %438 = sbr.rel (%p436) target = $region49
    $region48: #{tpu_custom_call.1} parent=1 // pred_region
      %s439 = scalar_lea.vmem [#allocation5], 384
      %v440 = vld [vmem:[%s439] sm:$0xff]
      %v441 = vld [vmem:[%s439 + $0x8] sm:$0xff]
      %v442 = vld [vmem:[%s439 + $0x10] sm:$0xff]
      %v443 = vld [vmem:[%s439 + $0x18] sm:$0xff]
      %v444 = vld [vmem:[%s439 + $0x20] sm:$0xff]
      %v445 = vld [vmem:[%s439 + $0x28] sm:$0xff]
      %v446 = vld [vmem:[%s439 + $0x30] sm:$0xff]
      %v447 = vld [vmem:[%s439 + $0x38] sm:$0xff]
      %v448 = vld [vmem:[%s439 + $0x40] sm:$0xff]
      %v449 = vld [vmem:[%s439 + $0x48] sm:$0xff]
      %v450 = vld [vmem:[%s439 + $0x50] sm:$0xff]
      %v451 = vld [vmem:[%s439 + $0x58] sm:$0xff]
      %v452 = vld [vmem:[%s439 + $0x60] sm:$0xff]
      %v453 = vld [vmem:[%s439 + $0x68] sm:$0xff]
      %v454 = vld [vmem:[%s439 + $0x70] sm:$0xff]
      %v455 = vld [vmem:[%s439 + $0x78] sm:$0xff]
      %s456 = scalar_lea.vmem %s4, 3
      %v457 = vld [vmem:[%s456] sm:$0x1]
      %v459 = vperm.slane %v457, 0
      %461 = vmatpush.msra.mxu0 %v455
      %462 = vmatpush.msra.mxu0 %v454
      %463 = vmatpush.msra.mxu0 %v453
      %464 = vmatpush.msra.mxu0 %v452
      %465 = vmatpush.msra.mxu0 %v451
      %466 = vmatpush.msra.mxu0 %v450
      %467 = vmatpush.msra.mxu0 %v449
      %468 = vmatpush.msra.mxu0 %v448
      %469 = vmatpush.msra.mxu0 %v447
      %470 = vmatpush.msra.mxu0 %v446
      %471 = vmatpush.msra.mxu0 %v445
      %472 = vmatpush.msra.mxu0 %v444
      %473 = vmatpush.msra.mxu0 %v443
      %474 = vmatpush.msra.mxu0 %v442
      %475 = vmatpush.msra.mxu0 %v441
      %476 = vmatpush.msra.mxu0 %v440
      %477 = vmatmul.f32.gmra.mxu0 %v67
      %v478 = vpop.f32.mrf.mxu0
      %v479 = vadd.f32 %v459, %v478
      %480 = vmatmul.f32.gmra.mxu0 %v68
      %v481 = vpop.f32.mrf.mxu0
      %v482 = vadd.f32 %v459, %v481
      %483 = vdwg.mxu0
      %v484 = vmax.f32 %v479, 0.0
      %v485 = vmax.f32 %v482, 0.0
      %s486 = scalar_lea.vmem [#allocation8], 384
      %v487 = vld [vmem:[%s486] sm:$0xff]
      %v488 = vld [vmem:[%s486 + $0x8] sm:$0xff]
      %v489 = vld [vmem:[%s486 + $0x10] sm:$0xff]
      %v490 = vld [vmem:[%s486 + $0x18] sm:$0xff]
      %v491 = vld [vmem:[%s486 + $0x20] sm:$0xff]
      %v492 = vld [vmem:[%s486 + $0x28] sm:$0xff]
      %v493 = vld [vmem:[%s486 + $0x30] sm:$0xff]
      %v494 = vld [vmem:[%s486 + $0x38] sm:$0xff]
      %v495 = vld [vmem:[%s486 + $0x40] sm:$0xff]
      %v496 = vld [vmem:[%s486 + $0x48] sm:$0xff]
      %v497 = vld [vmem:[%s486 + $0x50] sm:$0xff]
      %v498 = vld [vmem:[%s486 + $0x58] sm:$0xff]
      %v499 = vld [vmem:[%s486 + $0x60] sm:$0xff]
      %v500 = vld [vmem:[%s486 + $0x68] sm:$0xff]
      %v501 = vld [vmem:[%s486 + $0x70] sm:$0xff]
      %v502 = vld [vmem:[%s486 + $0x78] sm:$0xff]
      %s503 = scalar_lea.vmem %s6, 3
      %v504 = vld [vmem:[%s503] sm:$0x1]
      %v506 = vperm.slane %v504, 0
      %508 = vmatpush.msra.mxu0 %v502
      %509 = vmatpush.msra.mxu0 %v501
      %510 = vmatpush.msra.mxu0 %v500
      %511 = vmatpush.msra.mxu0 %v499
      %512 = vmatpush.msra.mxu0 %v498
      %513 = vmatpush.msra.mxu0 %v497
      %514 = vmatpush.msra.mxu0 %v496
      %515 = vmatpush.msra.mxu0 %v495
      %516 = vmatpush.msra.mxu0 %v494
      %517 = vmatpush.msra.mxu0 %v493
      %518 = vmatpush.msra.mxu0 %v492
      %519 = vmatpush.msra.mxu0 %v491
      %520 = vmatpush.msra.mxu0 %v490
      %521 = vmatpush.msra.mxu0 %v489
      %522 = vmatpush.msra.mxu0 %v488
      %523 = vmatpush.msra.mxu0 %v487
      %524 = vmatmul.f32.gmra.mxu0 %v484
      %v525 = vpop.f32.mrf.mxu0
      %v526 = vadd.f32 %v506, %v525
      %527 = vmatmul.f32.gmra.mxu0 %v485
      %v528 = vpop.f32.mrf.mxu0
      %v529 = vadd.f32 %v506, %v528
      %530 = vdwg.mxu0
      %vm531 = vcmp.ne.f32.partialorder %v526, %v526
      %vm532 = vcmp.ne.f32.partialorder %v529, %v529
      %v533 = vsel %vm531, 0.0, %v526
      %v534 = vsel %vm532, 0.0, %v529
      %v535 = vld [vmem:[#allocation2] sm:$0xff]
      %v536 = vld [vmem:[#allocation2 + $0x8] sm:$0xff]
      %s537 = scalar_lea.vmem %s2, 48
      %v538 = vld [vmem:[%s537] sm:$0xff]
      %v539 = vld [vmem:[%s537 + $0x8] sm:$0xff]
      %541 = vset.pattern.permute.xlu0 0
      %542 = vperm.xlu0 %541, %v538
      %v543 = vpop.permute.xlu0 %542
      %546 = vset.pattern.permute.xlu0 0
      %547 = vperm.xlu0 %546, %v539
      %v548 = vpop.permute.xlu0 %547
      %v550 = vmul.f32 %v543, %v533
      %v551 = vmul.f32 %v548, %v534
      %v552 = vadd.f32 %v535, %v550
      %v553 = vadd.f32 %v536, %v551
      %554 = vst [vmem:[#allocation2] sm:$0xff] %v552
      %555 = vst [vmem:[#allocation2 + $0x8] sm:$0xff] %v553
    $region49: #{tpu_custom_call.1} parent=1 // pred_fallthru
      _
    %v556 = vld [vmem:[#allocation2] sm:$0xff]
    %v557 = vld [vmem:[#allocation2 + $0x8] sm:$0xff]
    %558 = vst [vmem:[#allocation10] sm:$0xff] %v556
    %559 = vst [vmem:[#allocation10 + $0x8] sm:$0xff] %v557
    // Predicated region
    $region50: #{tpu_custom_call.1} parent=1 // pred_check
      _
    $region51: #{tpu_custom_call.1} parent=1 // pred_check_branch
      %561 = sbr.rel (0) target = $region53
    $region52: #{tpu_custom_call.1} parent=1 // pred_region
      %563 = vsyncadd [#allocation7], 0
      %s564 = sshll.u32 [#allocation10], 4
      %s565 = int_to_ptr.vmem [resolvable:$true] %s564
      %s566 = sshll.u32 %s7, 4
      %s567 = int_to_ptr.hbm [resolvable:$true] %s566
      %572 = dma.vmem_to_hbm [thread:$0]  %s565, 256, %s567, [#allocation7], 128, 128, 8
    $region53: #{tpu_custom_call.1} parent=1 // pred_fallthru
      _
    // Predicated region
    $region54: #{tpu_custom_call.1} parent=1 // pred_check
      _
    $region55: #{tpu_custom_call.1} parent=1 // pred_check_branch
      %574 = sbr.rel (0) target = $region57
    $region56: #{tpu_custom_call.1} parent=1 // pred_region
      %576 = dma.done [#allocation7], 256
    $region57: #{tpu_custom_call.1} parent=1 // pred_fallthru
      _
    %577 = vsyncpa [#allocation6], 1
    %578 = vsyncpa [#allocation9], 1
    %579 = vsyncpa [#allocation7], 1

</llo_original>
